<compile_context>
chip_gen: v7x
topology: tpu7x:2x2x1
jax: 0.10.0
libtpu: 0.0.40
codegen_flags: <defaults>
</compile_context>

<pallas_src>
import functools
import itertools

import numpy as np
import jax
import jax.numpy as jnp
from jax.experimental import pallas as pl
from jax.experimental.pallas import tpu as pltpu


# -----------------------------------------------------------------------------
# Pallas kernel.
#   inputs : num_cls class-logit tiles, each TRANSPOSED to (C_i, Q)
#            attn  (Q, C_attn), spatial (Q, C_sp), contacting (Q, C_con)
#   outputs: scores (num_cls, Q) f32, labels (num_cls, Q) i32   (lane-dense)
#            attn_probs (Q, C_attn)  [last column = 0, host slices it off]
#            spatial_probs, contacting_probs (sigmoid)
# -----------------------------------------------------------------------------
def _postprocess_kernel(num_cls, *refs):
    cls_refs = refs[:num_cls]
    attn_ref, sp_ref, con_ref = refs[num_cls:num_cls + 3]
    (scores_ref, labels_ref,
     attn_out_ref, sp_out_ref, con_out_ref) = refs[num_cls + 3:]

    # ---- class heads: softmax max/argmax over foreground classes ------------
    score_rows, label_rows = [], []
    for ref in cls_refs:
        x = ref[...]                                   # (C, Q): classes on sublanes
        if x.dtype != jnp.float32:
            x = x.astype(jnp.float32)
        c = x.shape[0]
        fg = x[: c - 1, :]                             # (C-1, Q) foreground logits
        bg = x[c - 1 : c, :]                           # (1,  Q) background logit
        m_fg = jnp.max(fg, axis=0, keepdims=True)      # (1, Q)
        m_all = jnp.maximum(m_fg, bg)                  # (1, Q) max over all classes
        denom = jnp.sum(jnp.exp(x - m_all), axis=0, keepdims=True)   # softmax denom
        # max foreground probability = exp(m_fg - m_all) / denom
        score_rows.append(jnp.exp(m_fg - m_all) * pl.reciprocal(denom))
        # first-index argmax on logits (same ties as argmax on probs), int32 path
        iota = jax.lax.broadcasted_iota(jnp.int32, fg.shape, 0)
        label_rows.append(jnp.min(jnp.where(fg >= m_fg, iota, jnp.int32(c - 1)),
                                  axis=0, keepdims=True))
    scores = score_rows[0] if num_cls == 1 else jnp.concatenate(score_rows, axis=0)
    labels = label_rows[0] if num_cls == 1 else jnp.concatenate(label_rows, axis=0)
    scores_ref[...] = scores
    labels_ref[...] = labels

    # ---- attention: masked softmax over [..., :-1], stored full width -------
    a = attn_ref[...]                                  # (Q, C_attn)
    if a.dtype != jnp.float32:
        a = a.astype(jnp.float32)
    ca = a.shape[-1]
    lane = jax.lax.broadcasted_iota(jnp.int32, a.shape, 1)
    fg_mask = lane < (ca - 1)
    a_m = jnp.where(fg_mask, a, jnp.float32(-1e30))
    am = jnp.max(a_m, axis=-1, keepdims=True)
    ae = jnp.where(fg_mask, jnp.exp(a_m - am), jnp.float32(0.0))
    attn_out_ref[...] = ae * pl.reciprocal(jnp.sum(ae, axis=-1, keepdims=True))

    # ---- spatial / contacting sigmoids --------------------------------------
    sp = sp_ref[...]
    if sp.dtype != jnp.float32:
        sp = sp.astype(jnp.float32)
    con = con_ref[...]
    if con.dtype != jnp.float32:
        con = con.astype(jnp.float32)
    sp_out_ref[...] = jax.nn.sigmoid(sp)
    con_out_ref[...] = jax.nn.sigmoid(con)


@functools.partial(jax.jit, static_argnums=0)
def _run_postprocess(num_cls, *arrays):
    """arrays = (*cls_logits, attn, sp, con), each [Q, C*] for a single frame."""
    cls_logits = arrays[:num_cls]
    attn_logits, sp_logits, con_logits = arrays[num_cls:]
    q = attn_logits.shape[0]

    # Queries on the lane axis for the class heads -> lane-dense score outputs.
    cls_t = tuple(jnp.transpose(x) for x in cls_logits)          # (C_i, Q)

    out_shape = (
        jax.ShapeDtypeStruct((num_cls, q), jnp.float32),          # scores (lane-dense)
        jax.ShapeDtypeStruct((num_cls, q), jnp.int32),            # labels (lane-dense)
        jax.ShapeDtypeStruct((q, attn_logits.shape[-1]), jnp.float32),  # attn (full width)
        jax.ShapeDtypeStruct(sp_logits.shape, jnp.float32),       # spatial probs
        jax.ShapeDtypeStruct(con_logits.shape, jnp.float32),      # contacting probs
    )

    n_in = sum(int(np.prod(a.shape)) for a in arrays)
    n_out = sum(int(np.prod(s.shape)) for s in out_shape)
    bytes_acc = int(sum(int(np.prod(a.shape)) * a.dtype.itemsize for a in arrays)
                    + 4 * n_out)

    vmem = pltpu.MemorySpace.VMEM
    return pl.pallas_call(
        functools.partial(_postprocess_kernel, num_cls),
        out_shape=out_shape,
        in_specs=[pl.BlockSpec(memory_space=vmem)] * (num_cls + 3),
        out_specs=tuple(pl.BlockSpec(memory_space=vmem) for _ in out_shape),
        compiler_params=pltpu.CompilerParams(vmem_limit_bytes=16 * 1024 * 1024),
        cost_estimate=pl.CostEstimate(flops=int(6 * n_in),
                                      transcendentals=int(n_in),
                                      bytes_accessed=bytes_acc),
    )(*cls_t, attn_logits, sp_logits, con_logits)


# -----------------------------------------------------------------------------
# Module wrapper mirroring the torch forward (math in one kernel, glue on host).
# -----------------------------------------------------------------------------
class PostProcessDSGG:
    def __init__(self, args):
        self.subject_category_id = args.subject_category_id
        self.use_matching = args.use_matching
        self.dsgg_task = args.dsgg_task
        self.no_update_pair = args.no_update_pair

    def forward(self, outputs, targets, cur_idx=0):
        target_sizes = jnp.stack([jnp.asarray(t['size']) for t in targets], axis=0)
        assert target_sizes.shape[1] == 2
        assert len(target_sizes) == 1
        num_valid_query = int(outputs['valid_num_list'][cur_idx])

        out_attn_logits = outputs['pred_attn_logits']
        out_spatial_logits = outputs['pred_spatial_logits']
        out_contacting_logits = outputs['pred_contacting_logits']
        assert len(out_attn_logits) == len(target_sizes)

        num_cls = 2 if self.dsgg_task == 'sgcls' else 1

        results = []
        for index in range(len(target_sizes)):
            cls_inputs = [outputs['pred_obj_logits'][index]]          # head 0 = obj
            if num_cls == 2:
                cls_inputs.append(outputs['pred_sub_logits'][index])  # head 1 = sub
            kern_out = _run_postprocess(num_cls, *cls_inputs,
                                        out_attn_logits[index],
                                        out_spatial_logits[index],
                                        out_contacting_logits[index])

            # --- batch every device->host pull into a single transfer ---------
            pull = {'kern': kern_out}
            if not self.no_update_pair:
                pull['sub_boxes'] = outputs['pred_sub_boxes'][index]
                pull['obj_boxes'] = outputs['pred_obj_boxes'][index]
            if self.dsgg_task == 'predcls':
                pull['tgt_obj_labels'] = targets[index]['obj_labels']
                pull['tgt_sub_boxes'] = targets[index]['sub_boxes']
                pull['tgt_obj_boxes'] = targets[index]['obj_boxes']
            else:
                pull['tgt_boxes'] = targets[index]['boxes']
            host = jax.device_get(pull)

            scores, labels, attn_probs, sp_probs, con_probs = host['kern']
            obj_scores_np = scores[0]
            obj_labels_np = labels[0]

            frame_pred = {}
            if not self.no_update_pair:
                frame_pred['pred_boxes'] = np.concatenate(
                    [host['sub_boxes'][:num_valid_query],
                     host['obj_boxes'][:num_valid_query]], axis=0)
            frame_pred['pair_idx'] = np.concatenate(
                [np.arange(num_valid_query)[:, None],
                 np.arange(num_valid_query, 2 * num_valid_query)[:, None]], axis=1)
            # kernel stores full-width attn (bg column = 0); torch softmaxes [..., :-1]
            frame_pred['attention_distribution'] = attn_probs[:num_valid_query, :-1]
            frame_pred['spatial_distribution'] = sp_probs[:num_valid_query]
            frame_pred['contacting_distribution'] = con_probs[:num_valid_query]

            if self.dsgg_task == 'predcls':
                if not self.no_update_pair:
                    frame_pred['pred_scores'] = np.concatenate(
                        [np.ones(num_valid_query), obj_scores_np[:num_valid_query]])
                    frame_pred['pred_labels'] = np.concatenate(
                        [np.ones(num_valid_query), obj_labels_np[:num_valid_query]])
                frame_pred['target_scores'] = np.concatenate(
                    [np.ones(num_valid_query), np.ones(num_valid_query)])
                frame_pred['target_labels'] = np.concatenate(
                    [np.ones(num_valid_query), host['tgt_obj_labels']])
                assert len(host['tgt_obj_labels']) == num_valid_query
                frame_pred['target_boxes'] = np.concatenate(
                    [host['tgt_sub_boxes'], host['tgt_obj_boxes']], axis=0)
            else:  # sgcls
                sub_scores_np = scores[1]
                sub_labels_np = labels[1]
                frame_pred['pred_scores'] = np.concatenate(
                    [sub_scores_np[:num_valid_query], obj_scores_np[:num_valid_query]])
                frame_pred['pred_labels'] = np.concatenate(
                    [sub_labels_np[:num_valid_query], obj_labels_np[:num_valid_query]])
                boxes = host['tgt_boxes']
                num_boxes = len(boxes)
                pair_indices = np.array(list(itertools.permutations(range(num_boxes), 2)))
                frame_pred['target_boxes'] = np.concatenate(
                    [boxes[pair_indices[:, 0]], boxes[pair_indices[:, 1]]], axis=0)
            results.append(frame_pred)
        return results

    __call__ = forward


# -----------------------------------------------------------------------------
# Demo / correctness check.
# -----------------------------------------------------------------------------
class _Args:
    subject_category_id = 1
    use_matching = False
    dsgg_task = 'predcls'
    no_update_pair = False


class _ArgsSgcls(_Args):
    dsgg_task = 'sgcls'


if __name__ == "__main__":
    key = jax.random.PRNGKey(0)
    B, Q = 1, 8              # module asserts batch == 1
    C_OBJ, C_ATTN, C_SP, C_CON = 9, 4, 6, 8
    NUM_VALID = Q
    NUM_TGT_BOXES = 4

    ks = jax.random.split(key, 12)
    outputs = {
        'valid_num_list': [NUM_VALID],
        'pred_obj_logits': jax.random.normal(ks[0], (B, Q, C_OBJ), jnp.float32),
        'pred_sub_logits': jax.random.normal(ks[9], (B, Q, C_OBJ), jnp.float32),
        'pred_sub_boxes': jax.nn.sigmoid(jax.random.normal(ks[1], (B, Q, 4), jnp.float32)),
        'pred_obj_boxes': jax.nn.sigmoid(jax.random.normal(ks[2], (B, Q, 4), jnp.float32)),
        'pred_attn_logits': jax.random.normal(ks[3], (B, Q, C_ATTN), jnp.float32),
        'pred_spatial_logits': jax.random.normal(ks[4], (B, Q, C_SP), jnp.float32),
        'pred_contacting_logits': jax.random.normal(ks[5], (B, Q, C_CON), jnp.float32),
    }
    targets = [{
        'size': jnp.array([480, 640], jnp.int32),
        'obj_labels': jax.random.randint(ks[6], (NUM_VALID,), 1, C_OBJ - 1),
        'sub_boxes': jax.nn.sigmoid(jax.random.normal(ks[7], (NUM_VALID, 4), jnp.float32)),
        'obj_boxes': jax.nn.sigmoid(jax.random.normal(ks[8], (NUM_VALID, 4), jnp.float32)),
        'boxes': jax.nn.sigmoid(jax.random.normal(ks[10], (NUM_TGT_BOXES, 4), jnp.float32)),
    }]

    # --- run the fused kernel once directly (2 class heads) and block --------
    kern_out = _run_postprocess(2,
                                outputs['pred_obj_logits'][0],
                                outputs['pred_sub_logits'][0],
                                outputs['pred_attn_logits'][0],
                                outputs['pred_spatial_logits'][0],
                                outputs['pred_contacting_logits'][0])
    kern_out = jax.block_until_ready(kern_out)
    scores, labels, attn_probs, sp_probs, con_probs = jax.device_get(kern_out)

    # --- plain-JAX reference for the hot path ---------------------------------
    obj_prob = jax.nn.softmax(outputs['pred_obj_logits'][0], axis=-1)
    ref_obj_scores = np.asarray(jnp.max(obj_prob[..., :-1], axis=-1))
    ref_obj_labels = np.asarray(jnp.argmax(obj_prob[..., :-1], axis=-1))
    sub_prob = jax.nn.softmax(outputs['pred_sub_logits'][0], axis=-1)
    ref_sub_scores = np.asarray(jnp.max(sub_prob[..., :-1], axis=-1))
    ref_sub_labels = np.asarray(jnp.argmax(sub_prob[..., :-1], axis=-1))
    ref_attn = np.asarray(jax.nn.softmax(outputs['pred_attn_logits'][0][..., :-1], axis=-1))
    ref_sp = np.asarray(jax.nn.sigmoid(outputs['pred_spatial_logits'][0]))
    ref_con = np.asarray(jax.nn.sigmoid(outputs['pred_contacting_logits'][0]))

    assert np.allclose(scores[0], ref_obj_scores, atol=1e-5)
    assert np.array_equal(labels[0], ref_obj_labels)
    assert np.allclose(scores[1], ref_sub_scores, atol=1e-5)
    assert np.array_equal(labels[1], ref_sub_labels)
    assert np.allclose(attn_probs[:, :-1], ref_attn, atol=1e-5)
    assert np.allclose(attn_probs[:, -1], 0.0, atol=1e-6)
    assert np.allclose(sp_probs, ref_sp, atol=1e-5)
    assert np.allclose(con_probs, ref_con, atol=1e-5)

    # --- full module forward, predcls -----------------------------------------
    postproc = PostProcessDSGG(_Args())
    results = postproc(outputs, targets, cur_idx=0)
    assert results[0]['pred_boxes'].shape == (2 * NUM_VALID, 4)
    assert results[0]['pair_idx'].shape == (NUM_VALID, 2)
    assert results[0]['attention_distribution'].shape == (NUM_VALID, C_ATTN - 1)
    assert results[0]['spatial_distribution'].shape == (NUM_VALID, C_SP)
    assert results[0]['contacting_distribution'].shape == (NUM_VALID, C_CON)
    assert results[0]['pred_scores'].shape == (2 * NUM_VALID,)
    assert np.allclose(results[0]['pred_scores'][NUM_VALID:], ref_obj_scores, atol=1e-5)
    assert np.array_equal(results[0]['pred_labels'][NUM_VALID:].astype(np.int64),
                          ref_obj_labels.astype(np.int64))
    assert results[0]['target_boxes'].shape == (2 * NUM_VALID, 4)

    # --- full module forward, sgcls (fused obj+sub heads, single kernel call) --
    postproc_sg = PostProcessDSGG(_ArgsSgcls())
    results_sg = postproc_sg(outputs, targets, cur_idx=0)
    assert results_sg[0]['pred_scores'].shape == (2 * NUM_VALID,)
    assert np.allclose(results_sg[0]['pred_scores'][:NUM_VALID], ref_sub_scores, atol=1e-5)
    assert np.allclose(results_sg[0]['pred_scores'][NUM_VALID:], ref_obj_scores, atol=1e-5)
    n_perm = NUM_TGT_BOXES * (NUM_TGT_BOXES - 1)
    assert results_sg[0]['target_boxes'].shape == (2 * n_perm, 4)

    print("KERNEL_OK")
</pallas_src>

<mosaic_0001>
module attributes {stable_mosaic.version = 11 : i64} {
  func.func @_postprocess_kernel(%arg0: memref<9x8xf32, #tpu.memory_space<vmem>>, %arg1: memref<9x8xf32, #tpu.memory_space<vmem>>, %arg2: memref<8x4xf32, #tpu.memory_space<vmem>>, %arg3: memref<8x6xf32, #tpu.memory_space<vmem>>, %arg4: memref<8x8xf32, #tpu.memory_space<vmem>>, %arg5: memref<2x8xf32, #tpu.memory_space<vmem>>, %arg6: memref<2x8xi32, #tpu.memory_space<vmem>>, %arg7: memref<8x4xf32, #tpu.memory_space<vmem>>, %arg8: memref<8x6xf32, #tpu.memory_space<vmem>>, %arg9: memref<8x8xf32, #tpu.memory_space<vmem>>) attributes {dimension_semantics = [], scalar_prefetch = 0 : i64, scratch_operands = 0 : i64, tpu.core_type = #tpu.core_type<tc>} {
    %c0 = arith.constant 0 : index
    %c0_0 = arith.constant 0 : index
    %0 = vector.load %arg0[%c0, %c0_0] : memref<9x8xf32, #tpu.memory_space<vmem>>, vector<9x8xf32>
    %1 = vector.extract_strided_slice %0 {offsets = [0, 0], sizes = [8, 8], strides = [1, 1]} : vector<9x8xf32> to vector<8x8xf32>
    %2 = vector.extract_strided_slice %0 {offsets = [8, 0], sizes = [1, 8], strides = [1, 1]} : vector<9x8xf32> to vector<1x8xf32>
    %cst = arith.constant dense<0xFF800000> : vector<8xf32>
    %3 = vector.multi_reduction <maximumf>, %1, %cst [0] : vector<8x8xf32> to vector<8xf32>
    %4 = vector.shape_cast %3 : vector<8xf32> to vector<1x8xf32>
    %5 = arith.maximumf %4, %2 : vector<1x8xf32>
    %6 = vector.broadcast %5 : vector<1x8xf32> to vector<9x8xf32>
    %7 = arith.subf %0, %6 : vector<9x8xf32>
    %8 = math.exp %7 : vector<9x8xf32>
    %cst_1 = arith.constant dense<0.000000e+00> : vector<8xf32>
    %9 = vector.multi_reduction <add>, %8, %cst_1 [0] : vector<9x8xf32> to vector<8xf32>
    %10 = vector.shape_cast %9 : vector<8xf32> to vector<1x8xf32>
    %11 = arith.subf %4, %5 : vector<1x8xf32>
    %12 = math.exp %11 : vector<1x8xf32>
    %13 = tpu.reciprocal %10 : vector<1x8xf32> -> vector<1x8xf32>
    %14 = arith.mulf %12, %13 : vector<1x8xf32>
    %15 = tpu.iota {dimensions = array<i32: 0>} : vector<8x8xi32>
    %16 = vector.broadcast %4 : vector<1x8xf32> to vector<8x8xf32>
    %17 = arith.cmpf oge, %1, %16 : vector<8x8xf32>
    %c8_i32 = arith.constant 8 : i32
    %18 = vector.broadcast %c8_i32 : i32 to vector<8x8xi32>
    %19 = arith.select %17, %15, %18 : vector<8x8xi1>, vector<8x8xi32>
    %cst_2 = arith.constant dense<2147483647> : vector<8xi32>
    %20 = vector.multi_reduction <minsi>, %19, %cst_2 [0] : vector<8x8xi32> to vector<8xi32>
    %21 = vector.shape_cast %20 : vector<8xi32> to vector<1x8xi32>
    %c0_3 = arith.constant 0 : index
    %c0_4 = arith.constant 0 : index
    %22 = vector.load %arg1[%c0_3, %c0_4] : memref<9x8xf32, #tpu.memory_space<vmem>>, vector<9x8xf32>
    %23 = vector.extract_strided_slice %22 {offsets = [0, 0], sizes = [8, 8], strides = [1, 1]} : vector<9x8xf32> to vector<8x8xf32>
    %24 = vector.extract_strided_slice %22 {offsets = [8, 0], sizes = [1, 8], strides = [1, 1]} : vector<9x8xf32> to vector<1x8xf32>
    %cst_5 = arith.constant dense<0xFF800000> : vector<8xf32>
    %25 = vector.multi_reduction <maximumf>, %23, %cst_5 [0] : vector<8x8xf32> to vector<8xf32>
    %26 = vector.shape_cast %25 : vector<8xf32> to vector<1x8xf32>
    %27 = arith.maximumf %26, %24 : vector<1x8xf32>
    %28 = vector.broadcast %27 : vector<1x8xf32> to vector<9x8xf32>
    %29 = arith.subf %22, %28 : vector<9x8xf32>
    %30 = math.exp %29 : vector<9x8xf32>
    %cst_6 = arith.constant dense<0.000000e+00> : vector<8xf32>
    %31 = vector.multi_reduction <add>, %30, %cst_6 [0] : vector<9x8xf32> to vector<8xf32>
    %32 = vector.shape_cast %31 : vector<8xf32> to vector<1x8xf32>
    %33 = arith.subf %26, %27 : vector<1x8xf32>
    %34 = math.exp %33 : vector<1x8xf32>
    %35 = tpu.reciprocal %32 : vector<1x8xf32> -> vector<1x8xf32>
    %36 = arith.mulf %34, %35 : vector<1x8xf32>
    %37 = tpu.iota {dimensions = array<i32: 0>} : vector<8x8xi32>
    %38 = vector.broadcast %26 : vector<1x8xf32> to vector<8x8xf32>
    %39 = arith.cmpf oge, %23, %38 : vector<8x8xf32>
    %c8_i32_7 = arith.constant 8 : i32
    %40 = vector.broadcast %c8_i32_7 : i32 to vector<8x8xi32>
    %41 = arith.select %39, %37, %40 : vector<8x8xi1>, vector<8x8xi32>
    %cst_8 = arith.constant dense<2147483647> : vector<8xi32>
    %42 = vector.multi_reduction <minsi>, %41, %cst_8 [0] : vector<8x8xi32> to vector<8xi32>
    %43 = vector.shape_cast %42 : vector<8xi32> to vector<1x8xi32>
    %44 = tpu.concatenate %14, %36 in 0 : vector<1x8xf32>, vector<1x8xf32> -> vector<2x8xf32>
    %45 = tpu.concatenate %21, %43 in 0 : vector<1x8xi32>, vector<1x8xi32> -> vector<2x8xi32>
    %c0_9 = arith.constant 0 : index
    %c0_10 = arith.constant 0 : index
    %46 = vector.load %arg5[%c0_9, %c0_10] : memref<2x8xf32, #tpu.memory_space<vmem>>, vector<2x8xf32>
    tpu.vector_store %arg5[%c0_9, %c0_10], %44 {strides = array<i32>} : memref<2x8xf32, #tpu.memory_space<vmem>>, vector<2x8xf32>,
    %c0_11 = arith.constant 0 : index
    %c0_12 = arith.constant 0 : index
    %47 = vector.load %arg6[%c0_11, %c0_12] : memref<2x8xi32, #tpu.memory_space<vmem>>, vector<2x8xi32>
    tpu.vector_store %arg6[%c0_11, %c0_12], %45 {strides = array<i32>} : memref<2x8xi32, #tpu.memory_space<vmem>>, vector<2x8xi32>,
    %c0_13 = arith.constant 0 : index
    %c0_14 = arith.constant 0 : index
    %48 = vector.load %arg2[%c0_13, %c0_14] : memref<8x4xf32, #tpu.memory_space<vmem>>, vector<8x4xf32>
    %49 = tpu.iota {dimensions = array<i32: 1>} : vector<8x4xi32>
    %c3_i32 = arith.constant 3 : i32
    %50 = vector.broadcast %c3_i32 : i32 to vector<8x4xi32>
    %51 = arith.cmpi slt, %49, %50 : vector<8x4xi32>
    %cst_15 = arith.constant -1.000000e+30 : f32
    %52 = vector.broadcast %cst_15 : f32 to vector<8x4xf32>
    %53 = arith.select %51, %48, %52 : vector<8x4xi1>, vector<8x4xf32>
    %cst_16 = arith.constant dense<0xFF800000> : vector<8xf32>
    %54 = vector.multi_reduction <maximumf>, %53, %cst_16 [1] : vector<8x4xf32> to vector<8xf32>
    %55 = vector.shape_cast %54 : vector<8xf32> to vector<8x1xf32>
    %56 = vector.broadcast %55 : vector<8x1xf32> to vector<8x4xf32>
    %57 = arith.subf %53, %56 : vector<8x4xf32>
    %58 = math.exp %57 : vector<8x4xf32>
    %cst_17 = arith.constant 0.000000e+00 : f32
    %59 = vector.broadcast %cst_17 : f32 to vector<8x4xf32>
    %60 = arith.select %51, %58, %59 : vector<8x4xi1>, vector<8x4xf32>
    %cst_18 = arith.constant dense<0.000000e+00> : vector<8xf32>
    %61 = vector.multi_reduction <add>, %60, %cst_18 [1] : vector<8x4xf32> to vector<8xf32>
    %62 = vector.shape_cast %61 : vector<8xf32> to vector<8x1xf32>
    %63 = tpu.reciprocal %62 : vector<8x1xf32> -> vector<8x1xf32>
    %64 = vector.broadcast %63 : vector<8x1xf32> to vector<8x4xf32>
    %65 = arith.mulf %60, %64 : vector<8x4xf32>
    %c0_19 = arith.constant 0 : index
    %c0_20 = arith.constant 0 : index
    %66 = vector.load %arg7[%c0_19, %c0_20] : memref<8x4xf32, #tpu.memory_space<vmem>>, vector<8x4xf32>
    tpu.vector_store %arg7[%c0_19, %c0_20], %65 {strides = array<i32>} : memref<8x4xf32, #tpu.memory_space<vmem>>, vector<8x4xf32>,
    %c0_21 = arith.constant 0 : index
    %c0_22 = arith.constant 0 : index
    %67 = vector.load %arg3[%c0_21, %c0_22] : memref<8x6xf32, #tpu.memory_space<vmem>>, vector<8x6xf32>
    %c0_23 = arith.constant 0 : index
    %c0_24 = arith.constant 0 : index
    %68 = vector.load %arg4[%c0_23, %c0_24] : memref<8x8xf32, #tpu.memory_space<vmem>>, vector<8x8xf32>
    %69 = arith.negf %67 : vector<8x6xf32>
    %70 = math.exp %69 : vector<8x6xf32>
    %cst_25 = arith.constant 1.000000e+00 : f32
    %71 = vector.broadcast %cst_25 : f32 to vector<8x6xf32>
    %72 = arith.addf %71, %70 : vector<8x6xf32>
    %73 = arith.divf %71, %72 : vector<8x6xf32>
    %c0_26 = arith.constant 0 : index
    %c0_27 = arith.constant 0 : index
    %74 = vector.load %arg8[%c0_26, %c0_27] : memref<8x6xf32, #tpu.memory_space<vmem>>, vector<8x6xf32>
    tpu.vector_store %arg8[%c0_26, %c0_27], %73 {strides = array<i32>} : memref<8x6xf32, #tpu.memory_space<vmem>>, vector<8x6xf32>,
    %75 = arith.negf %68 : vector<8x8xf32>
    %76 = math.exp %75 : vector<8x8xf32>
    %cst_28 = arith.constant 1.000000e+00 : f32
    %77 = vector.broadcast %cst_28 : f32 to vector<8x8xf32>
    %78 = arith.addf %77, %76 : vector<8x8xf32>
    %79 = arith.divf %77, %78 : vector<8x8xf32>
    %c0_29 = arith.constant 0 : index
    %c0_30 = arith.constant 0 : index
    %80 = vector.load %arg9[%c0_29, %c0_30] : memref<8x8xf32, #tpu.memory_space<vmem>>, vector<8x8xf32>
    tpu.vector_store %arg9[%c0_29, %c0_30], %79 {strides = array<i32>} : memref<8x8xf32, #tpu.memory_space<vmem>>, vector<8x8xf32>,
    return
  }
}

</mosaic_0001>

<llo_original>
// kernel: _run_postprocess.1
$region0: #{_run_postprocess.1}
  #allocation0 [shape = 'u32[]', space=smem, size = 0x4, offset = 0x4, fixed_abs, tag = 'smem constant byte address 0x4 - core index']
  #allocation1 [shape = 'u32[144,128]{1,0:T(1,128)}', space=vmem, size = 0x12000, scoped, tag = 'internal scratch']
  %s0 = inlined_call_operand.vmem [shape: f32[9,8], index: 0, kind: input, shape index: {}]
  %s1 = inlined_call_operand.vmem [shape: f32[9,8], index: 1, kind: input, shape index: {}]
  %s2 = inlined_call_operand.vmem [shape: f32[8,4], index: 2, kind: input, shape index: {}]
  %s3 = inlined_call_operand.vmem [shape: f32[8,6], index: 3, kind: input, shape index: {}]
  %s4 = inlined_call_operand.vmem [shape: f32[8,8], index: 4, kind: input, shape index: {}]
  %s5 = inlined_call_operand.hbm [shape: f32[2,8], index: 5, kind: output, shape index: {0}]
  %s6 = inlined_call_operand.hbm [shape: s32[2,8], index: 6, kind: output, shape index: {1}]
  %s7 = inlined_call_operand.vmem [shape: f32[8,4], index: 7, kind: output, shape index: {2}]
  %s8 = inlined_call_operand.hbm [shape: f32[8,6], index: 8, kind: output, shape index: {3}]
  %s9 = inlined_call_operand.hbm [shape: f32[8,8], index: 9, kind: output, shape index: {4}]
  %10 = xla_tuple %s5, %s6, %s7, %s8, %s9
  %s11 = sld [smem:[#allocation0]]
  $region62: #{_run_postprocess.1} parent=0
    _
  %s13 = ssub.s32 1, %s11
  %s14 = scalar_select 0, %s13, %s11
  $region1: #{_run_postprocess.1} parent=0
    #allocation2 [shape = 'u8[1024]{0}', space=vmem, size = 0x400, scoped, tag = 'output window, operand 0, single buffered']
    #allocation3 [shape = 's32[1]{0}', space=sflag, size = 0x4, scoped, tag = 'scoped memory for _run_postprocess.1']
    #allocation4 [shape = 'u8[1024]{0}', space=vmem, size = 0x400, scoped, tag = 'output window, operand 1, single buffered']
    #allocation5 [shape = 's32[1]{0}', space=sflag, size = 0x4, scoped, tag = 'scoped memory for _run_postprocess.1']
    #allocation6 [shape = 'u8[4096]{0}', space=vmem, size = 0x1000, scoped, tag = 'output window, operand 3, single buffered']
    #allocation7 [shape = 'u8[4096]{0}', space=vmem, size = 0x1000, scoped, tag = 'output window, operand 4, single buffered']
    #allocation8 [shape = 's32[1]{0}', space=sflag, size = 0x4, scoped, tag = 'scoped memory for _run_postprocess.1']
    %15 = vsyncpa [#allocation3], 0
    %16 = vsyncpa [#allocation5], 0
    %17 = vsyncpa [#allocation8], 0
    // Predicated region
    $region2: #{_run_postprocess.1} parent=1 // pred_check
      _
    $region3: #{_run_postprocess.1} parent=1 // pred_check_branch
      %19 = sbr.rel (0) target = $region5
    $region4: #{_run_postprocess.1} parent=1 // pred_region
      _
    $region5: #{_run_postprocess.1} parent=1 // pred_fallthru
      _
    // Predicated region
    $region6: #{_run_postprocess.1} parent=1 // pred_check
      _
    $region7: #{_run_postprocess.1} parent=1 // pred_check_branch
      %21 = sbr.rel (0) target = $region9
    $region8: #{_run_postprocess.1} parent=1 // pred_region
      _
    $region9: #{_run_postprocess.1} parent=1 // pred_fallthru
      _
    // Predicated region
    $region10: #{_run_postprocess.1} parent=1 // pred_check
      _
    $region11: #{_run_postprocess.1} parent=1 // pred_check_branch
      %23 = sbr.rel (0) target = $region13
    $region12: #{_run_postprocess.1} parent=1 // pred_region
      _
    $region13: #{_run_postprocess.1} parent=1 // pred_fallthru
      _
    // Predicated region
    $region14: #{_run_postprocess.1} parent=1 // pred_check
      _
    $region15: #{_run_postprocess.1} parent=1 // pred_check_branch
      %25 = sbr.rel (0) target = $region17
    $region16: #{_run_postprocess.1} parent=1 // pred_region
      _
    $region17: #{_run_postprocess.1} parent=1 // pred_fallthru
      _
    // Predicated region
    $region18: #{_run_postprocess.1} parent=1 // pred_check
      _
    $region19: #{_run_postprocess.1} parent=1 // pred_check_branch
      %27 = sbr.rel (0) target = $region21
    $region20: #{_run_postprocess.1} parent=1 // pred_region
      _
    $region21: #{_run_postprocess.1} parent=1 // pred_fallthru
      _
    %v28 = vld [vmem:[%s0] sm:$0xff]
    %v29 = vld [vmem:[%s0 + $0x8] sm:$0x1]
    %vm30 = vcmask 64512
    %v31 = vsel %vm30, %v28, -inf
    %v32 = vrot.slane %v31, 4
    %v33 = vmax.f32 %v31, %v32
    %v34 = vrot.slane %v33, 2
    %v35 = vmax.f32 %v33, %v34
    %v36 = vrot.slane %v35, 1
    %v37 = vmax.f32 %v35, %v36
    %v38 = vmax.f32 %v37, %v29
    %v39 = vlaneseq
    %v40 = vshrl.u32 %v39, 7
    %v41 = vsub.s32 0, %v40
    %v42 = vrot.slane %v38, %v41
    %v43 = vsub.f32 %v28, %v42
    %v44 = vsub.f32 %v29, %v42
    %v45 = vmul.f32 %v43, 1.442695
    %v46 = vpow.pop %v45
    %v47 = vmul.f32 %v44, 1.442695
    %v48 = vpow.pop %v47
    %v49 = vsel %vm30, %v46, 0.0
    %vm50 = vcmask 57344
    %v51 = vsel %vm50, %v48, 0.0
    %v52 = vadd.f32 %v49, %v51
    %v53 = vrot.slane %v52, 4
    %v54 = vadd.f32 %v52, %v53
    %v55 = vrot.slane %v54, 2
    %v56 = vadd.f32 %v54, %v55
    %v57 = vrot.slane %v56, 1
    %v58 = vadd.f32 %v56, %v57
    %v59 = vsub.f32 %v37, %v38
    %v60 = vmul.f32 %v59, 1.442695
    %v61 = vpow.pop %v60
    %v62 = vrcp.pop %v58
    %v63 = vmul.f32 %v61, %v62
    %v64 = vlaneseq
    %v65 = vshrl.u32 %v64, 7
    %vm66 = vcmp.ge.f32.partialorder %v28, %v37
    %v67 = vsel %vm66, %v65, 8
    %v68 = vsel %vm30, %v67, 2147483647
    %v69 = vrot.slane %v68, 4
    %vm70 = vcmp.lt.s32.totalorder %v68, %v69
    %v71 = vsel %vm70, %v68, %v69
    %v72 = vrot.slane %v71, 2
    %vm73 = vcmp.lt.s32.totalorder %v71, %v72
    %v74 = vsel %vm73, %v71, %v72
    %v75 = vrot.slane %v74, 1
    %vm76 = vcmp.lt.s32.totalorder %v74, %v75
    %v77 = vsel %vm76, %v74, %v75
    %v78 = vld [vmem:[%s1] sm:$0xff]
    %v79 = vld [vmem:[%s1 + $0x8] sm:$0x1]
    %v80 = vsel %vm30, %v78, -inf
    %v81 = vrot.slane %v80, 4
    %v82 = vmax.f32 %v80, %v81
    %v83 = vrot.slane %v82, 2
    %v84 = vmax.f32 %v82, %v83
    %v85 = vrot.slane %v84, 1
    %v86 = vmax.f32 %v84, %v85
    %v87 = vmax.f32 %v86, %v79
    %v88 = vlaneseq
    %v89 = vshrl.u32 %v88, 7
    %v90 = vsub.s32 0, %v89
    %v91 = vrot.slane %v87, %v90
    %v92 = vsub.f32 %v78, %v91
    %v93 = vsub.f32 %v79, %v91
    %v94 = vmul.f32 %v92, 1.442695
    %v95 = vpow.pop %v94
    %v96 = vmul.f32 %v93, 1.442695
    %v97 = vpow.pop %v96
    %v98 = vsel %vm30, %v95, 0.0
    %v99 = vsel %vm50, %v97, 0.0
    %v100 = vadd.f32 %v98, %v99
    %v101 = vrot.slane %v100, 4
    %v102 = vadd.f32 %v100, %v101
    %v103 = vrot.slane %v102, 2
    %v104 = vadd.f32 %v102, %v103
    %v105 = vrot.slane %v104, 1
    %v106 = vadd.f32 %v104, %v105
    %v107 = vsub.f32 %v86, %v87
    %v108 = vmul.f32 %v107, 1.442695
    %v109 = vpow.pop %v108
    %v110 = vrcp.pop %v106
    %v111 = vmul.f32 %v109, %v110
    %vm112 = vcmp.ge.f32.partialorder %v78, %v86
    %v113 = vsel %vm112, %v65, 8
    %v114 = vsel %vm30, %v113, 2147483647
    %v115 = vrot.slane %v114, 4
    %vm116 = vcmp.lt.s32.totalorder %v114, %v115
    %v117 = vsel %vm116, %v114, %v115
    %v118 = vrot.slane %v117, 2
    %vm119 = vcmp.lt.s32.totalorder %v117, %v118
    %v120 = vsel %vm119, %v117, %v118
    %v121 = vrot.slane %v120, 1
    %vm122 = vcmp.lt.s32.totalorder %v120, %v121
    %v123 = vsel %vm122, %v120, %v121
    %v125 = vrot.slane %v111, 7
    %vm127 = vcmask 1040384
    %v128 = vsel %vm127, %v63, %v125
    %v129 = vsel %vm127, %v77, %v123
    %vm130 = vcmask 58368
    %131 = vst.msk [vmem:[#allocation2] sm:$0x3] %vm130, %v128
    %132 = vst.msk [vmem:[#allocation4] sm:$0x3] %vm130, %v129
    %v133 = vld [vmem:[%s2] sm:$0xff]
    %v134 = vlaneseq
    %v135 = vand.u32 %v134, 127
    %vm136 = vcmp.lt.s32.totalorder %v135, 3
    %v137 = vsel %vm136, %v133, -1e+30
    %vm138 = vcmask 31744
    %v139 = vsel %vm138, %v137, -inf
    %140 = vmax.xlane.f32.xlu0 %v139
    %v141 = vpop.xlane.xlu0 %140
    %v142 = vsub.f32 %v137, %v141
    %v143 = vmul.f32 %v142, 1.442695
    %v144 = vpow.pop %v143
    %v145 = vsel %vm136, %v144, 0.0
    %v146 = vsel %vm138, %v145, 0.0
    %147 = vadd.xlane.f32.xlu0 %v146
    %v148 = vpop.xlane.xlu0 %147
    %v149 = vrcp.pop %v148
    %v150 = vmul.f32 %v145, %v149
    %151 = vst.msk [vmem:[%s7] sm:$0xff] %vm138, %v150
    %v152 = vld [vmem:[%s3] sm:$0xff]
    %v153 = vld [vmem:[%s4] sm:$0xff]
    %v154 = vxor.u32 %v152, 2147483648
    %v155 = vmul.f32 %v154, 1.442695
    %v156 = vpow.pop %v155
    %v157 = vadd.f32 %v156, 1.0
    %v158 = vrcp.pop %v157
    %v159 = vmul.f32 1.0, %v158
    %vm160 = vcmask 48128
    %161 = vst.msk [vmem:[#allocation6] sm:$0xff] %vm160, %v159
    %v162 = vxor.u32 %v153, 2147483648
    %v163 = vmul.f32 %v162, 1.442695
    %v164 = vpow.pop %v163
    %v165 = vadd.f32 %v164, 1.0
    %v166 = vrcp.pop %v165
    %v167 = vmul.f32 1.0, %v166
    %168 = vst.msk [vmem:[#allocation7] sm:$0xff] %vm30, %v167
    // Predicated region
    $region22: #{_run_postprocess.1} parent=1 // pred_check
      _
    $region23: #{_run_postprocess.1} parent=1 // pred_check_branch
      %170 = sbr.rel (0) target = $region25
    $region24: #{_run_postprocess.1} parent=1 // pred_region
      %s172 = ssub.s32 32, 32
      %173 = vsyncadd [#allocation3], %s172
      %s175 = sshll.u32 [#allocation2], 4
      %s176 = int_to_ptr.vmem [resolvable:$true] %s175
      %178 = dma.vmem_to_hbm [thread:$0]  %s176, 32, %s5, [#allocation3]
    $region25: #{_run_postprocess.1} parent=1 // pred_fallthru
      _
    // Predicated region
    $region26: #{_run_postprocess.1} parent=1 // pred_check
      _
    $region27: #{_run_postprocess.1} parent=1 // pred_check_branch
      %180 = sbr.rel (0) target = $region29
    $region28: #{_run_postprocess.1} parent=1 // pred_region
      %s182 = ssub.s32 32, 32
      %183 = vsyncadd [#allocation5], %s182
      %s185 = sshll.u32 [#allocation4], 4
      %s186 = int_to_ptr.vmem [resolvable:$true] %s185
      %188 = dma.vmem_to_hbm [thread:$0]  %s186, 32, %s6, [#allocation5]
    $region29: #{_run_postprocess.1} parent=1 // pred_fallthru
      _
    // Predicated region
    $region30: #{_run_postprocess.1} parent=1 // pred_check
      _
    $region31: #{_run_postprocess.1} parent=1 // pred_check_branch
      %190 = sbr.rel (0) target = $region33
    $region32: #{_run_postprocess.1} parent=1 // pred_region
      _
    $region33: #{_run_postprocess.1} parent=1 // pred_fallthru
      _
    // Predicated region
    $region34: #{_run_postprocess.1} parent=1 // pred_check
      _
    $region35: #{_run_postprocess.1} parent=1 // pred_check_branch
      %192 = sbr.rel (0) target = $region37
    $region36: #{_run_postprocess.1} parent=1 // pred_region
      %s194 = ssub.s32 128, 128
      %195 = vsyncadd [#allocation5], %s194
      %s197 = sshll.u32 [#allocation6], 4
      %s198 = int_to_ptr.vmem [resolvable:$true] %s197
      %200 = dma.vmem_to_hbm [thread:$0]  %s198, 128, %s8, [#allocation5]
    $region37: #{_run_postprocess.1} parent=1 // pred_fallthru
      _
    // Predicated region
    $region38: #{_run_postprocess.1} parent=1 // pred_check
      _
    $region39: #{_run_postprocess.1} parent=1 // pred_check_branch
      %202 = sbr.rel (0) target = $region41
    $region40: #{_run_postprocess.1} parent=1 // pred_region
      %s204 = ssub.s32 128, 128
      %205 = vsyncadd [#allocation8], %s204
      %s207 = sshll.u32 [#allocation7], 4
      %s208 = int_to_ptr.vmem [resolvable:$true] %s207
      %210 = dma.vmem_to_hbm [thread:$0]  %s208, 128, %s9, [#allocation8]
    $region41: #{_run_postprocess.1} parent=1 // pred_fallthru
      _
    // Predicated region
    $region42: #{_run_postprocess.1} parent=1 // pred_check
      _
    $region43: #{_run_postprocess.1} parent=1 // pred_check_branch
      %212 = sbr.rel (0) target = $region45
    $region44: #{_run_postprocess.1} parent=1 // pred_region
      %213 = dma.done [#allocation3], 32
    $region45: #{_run_postprocess.1} parent=1 // pred_fallthru
      _
    // Predicated region
    $region46: #{_run_postprocess.1} parent=1 // pred_check
      _
    $region47: #{_run_postprocess.1} parent=1 // pred_check_branch
      %215 = sbr.rel (0) target = $region49
    $region48: #{_run_postprocess.1} parent=1 // pred_region
      %216 = dma.done [#allocation5], 32
    $region49: #{_run_postprocess.1} parent=1 // pred_fallthru
      _
    // Predicated region
    $region50: #{_run_postprocess.1} parent=1 // pred_check
      _
    $region51: #{_run_postprocess.1} parent=1 // pred_check_branch
      %218 = sbr.rel (0) target = $region53
    $region52: #{_run_postprocess.1} parent=1 // pred_region
      _
    $region53: #{_run_postprocess.1} parent=1 // pred_fallthru
      _
    // Predicated region
    $region54: #{_run_postprocess.1} parent=1 // pred_check
      _
    $region55: #{_run_postprocess.1} parent=1 // pred_check_branch
      %220 = sbr.rel (0) target = $region57
    $region56: #{_run_postprocess.1} parent=1 // pred_region
      %221 = dma.done [#allocation5], 128
    $region57: #{_run_postprocess.1} parent=1 // pred_fallthru
      _
    // Predicated region
    $region58: #{_run_postprocess.1} parent=1 // pred_check
      _
    $region59: #{_run_postprocess.1} parent=1 // pred_check_branch
      %223 = sbr.rel (0) target = $region61
    $region60: #{_run_postprocess.1} parent=1 // pred_region
      %224 = dma.done [#allocation8], 128
    $region61: #{_run_postprocess.1} parent=1 // pred_fallthru
      _
    %225 = vsyncpa [#allocation3], 1
    %226 = vsyncpa [#allocation5], 1
    %227 = vsyncpa [#allocation8], 1

</llo_original>
